<compile_context>
chip_gen: v7x
topology: tpu7x:2x2x1
jax: 0.10.0
libtpu: 0.0.40
codegen_flags: <defaults>
</compile_context>

<pallas_src>
import jax
import jax.numpy as jnp
from jax.experimental import pallas as pl
from jax.experimental.pallas import tpu as pltpu


def qnet_kernel(x_ref, w1_ref, b1_ref, w2_ref, b2_ref, w3_ref, b3_ref, o_ref):
    # layer 1: ReLU(x @ W1 + b1)   (bf16 dot, f32 accumulate, f32 elementwise)
    h1 = jnp.dot(x_ref[...], w1_ref[...], preferred_element_type=jnp.float32)
    h1 = jnp.maximum(h1 + b1_ref[...], 0.0)
    # layer 2: ReLU(h1 @ W2 + b2)
    h2 = jnp.dot(h1.astype(jnp.bfloat16), w2_ref[...],
                 preferred_element_type=jnp.float32)
    h2 = jnp.maximum(h2 + b2_ref[...], 0.0)
    # layer 3: h2 @ W3 + b3  (no activation; W3/b3 are lane-padded to 128)
    out = jnp.dot(h2.astype(jnp.bfloat16), w3_ref[...],
                  preferred_element_type=jnp.float32)
    o_ref[...] = (out + b3_ref[...]).astype(o_ref.dtype)


def linear_qnet_forward(x, params, *, tb=128):
    """x: [B, inputSize] f32. params: dict of W1,b1,W2,b2,W3,b3 (W as [in,out])."""
    w1, b1 = params["w1"], params["b1"]
    w2, b2 = params["w2"], params["b2"]
    w3, b3 = params["w3"], params["b3"]

    B, in_f = x.shape
    h1_f = w1.shape[1]
    h2_f = w2.shape[1]
    out_f = w3.shape[1]

    # --- lane-dense output: pad final layer width up to a multiple of 128 ---
    out_pad = max(128, ((out_f + 127) // 128) * 128)
    w3p = jnp.zeros((h2_f, out_pad), w3.dtype).at[:, :out_f].set(w3)
    b3p = jnp.zeros((1, out_pad), b3.dtype).at[:, :out_f].set(b3)

    # --- adaptive batch tile: multiple of 8 sublanes, capped at `tb` ---
    tb_eff = min(tb, ((B + 7) // 8) * 8)
    nb = pl.cdiv(B, tb_eff)
    b_pad = nb * tb_eff
    if b_pad != B:
        x = jnp.pad(x, ((0, b_pad - B), (0, 0)))

    # --- bf16 operands for the MXU; biases stay f32 ---
    xb = x.astype(jnp.bfloat16)
    w1b = w1.astype(jnp.bfloat16)
    w2b = w2.astype(jnp.bfloat16)
    w3b = w3p.astype(jnp.bfloat16)
    b1f = b1.astype(jnp.float32)
    b2f = b2.astype(jnp.float32)
    b3f = b3p.astype(jnp.float32)

    flops = 2 * b_pad * (in_f * h1_f + h1_f * h2_f + h2_f * out_pad)
    bytes_accessed = (xb.size * 2
                      + (w1b.size + w2b.size + w3b.size) * 2
                      + (b1f.size + b2f.size + b3f.size) * 4
                      + b_pad * out_pad * 4)

    def resident(a):
        # weights/biases: one full-array block, same block for every grid step
        return pl.BlockSpec(a.shape, lambda i: (0,) * a.ndim)

    out = pl.pallas_call(
        qnet_kernel,
        out_shape=jax.ShapeDtypeStruct((b_pad, out_pad), jnp.float32),
        grid=(nb,),
        in_specs=[
            pl.BlockSpec((tb_eff, in_f), lambda i: (i, 0)),   # x: tiled over batch
            resident(w1b), resident(b1f),
            resident(w2b), resident(b2f),
            resident(w3b), resident(b3f),
        ],
        out_specs=pl.BlockSpec((tb_eff, out_pad), lambda i: (i, 0)),
        compiler_params=pltpu.CompilerParams(
            dimension_semantics=("parallel",)),
        cost_estimate=pl.CostEstimate(
            flops=flops, transcendentals=0, bytes_accessed=bytes_accessed),
    )(xb, w1b, b1f, w2b, b2f, w3b, b3f)

    return out[:B, :out_f]


def init_params(key, input_size, hidden1, hidden2, output_size):
    """Deterministic init mimicking nn.Linear's U(-1/sqrt(fan_in), 1/sqrt(fan_in))."""
    def layer(k, fan_in, fan_out):
        kw, kb = jax.random.split(k)
        bound = 1.0 / jnp.sqrt(fan_in)
        # stored as [in, out] (transposed vs. PyTorch [out, in])
        w = jax.random.uniform(kw, (fan_in, fan_out), jnp.float32, -bound, bound)
        b = jax.random.uniform(kb, (1, fan_out), jnp.float32, -bound, bound)
        return w, b

    k1, k2, k3 = jax.random.split(key, 3)
    w1, b1 = layer(k1, input_size, hidden1)
    w2, b2 = layer(k2, hidden1, hidden2)
    w3, b3 = layer(k3, hidden2, output_size)
    return {"w1": w1, "b1": b1, "w2": w2, "b2": b2, "w3": w3, "b3": b3}


def reference_forward(x, p):
    """Same bf16-operand / f32-accumulate recipe as the kernel."""
    xb = x.astype(jnp.bfloat16)
    w1 = p["w1"].astype(jnp.bfloat16)
    w2 = p["w2"].astype(jnp.bfloat16)
    w3 = p["w3"].astype(jnp.bfloat16)
    h1 = jnp.maximum(
        jnp.dot(xb, w1, preferred_element_type=jnp.float32) + p["b1"], 0.0)
    h2 = jnp.maximum(
        jnp.dot(h1.astype(jnp.bfloat16), w2,
                preferred_element_type=jnp.float32) + p["b2"], 0.0)
    return (jnp.dot(h2.astype(jnp.bfloat16), w3,
                    preferred_element_type=jnp.float32) + p["b3"])


if __name__ == "__main__":
    # Snake-game-style Q-net: 16 -> 32 -> 32 -> 4.
    input_size, hidden1, hidden2, output_size = 16, 32, 32, 4

    key = jax.random.PRNGKey(0)
    kp, kx1, kx2 = jax.random.split(key, 3)
    params = init_params(kp, input_size, hidden1, hidden2, output_size)

    # Case 1: replay batch of 256 states -> two 128-row tiles through the grid.
    x_big = jax.random.normal(kx1, (256, input_size), jnp.float32)
    out_big = jax.block_until_ready(linear_qnet_forward(x_big, params, tb=128))
    ref_big = reference_forward(x_big, params)
    assert out_big.shape == (256, output_size)
    assert jnp.allclose(out_big, ref_big, atol=1e-3, rtol=1e-3), "mismatch (batch=256)"

    # Case 2: tiny inference batch -> adaptive 8-row tile, no 128-row padding.
    x_small = jax.random.normal(kx2, (2, input_size), jnp.float32)
    out_small = jax.block_until_ready(linear_qnet_forward(x_small, params, tb=128))
    ref_small = reference_forward(x_small, params)
    assert out_small.shape == (2, output_size)
    assert jnp.allclose(out_small, ref_small, atol=1e-3, rtol=1e-3), "mismatch (batch=2)"

    # TODO(synk): save()/loadModel() are file-I/O utilities with no kernel
    # equivalent; they are intentionally not implemented.
    print("KERNEL_OK")
</pallas_src>

<mosaic_0001>
module attributes {stable_mosaic.version = 11 : i64} {
  func.func @qnet_kernel(%arg0: i32, %arg1: memref<128x16xbf16, #tpu.memory_space<vmem>>, %arg2: memref<16x32xbf16, #tpu.memory_space<vmem>>, %arg3: memref<1x32xf32, #tpu.memory_space<vmem>>, %arg4: memref<32x32xbf16, #tpu.memory_space<vmem>>, %arg5: memref<1x32xf32, #tpu.memory_space<vmem>>, %arg6: memref<32x128xbf16, #tpu.memory_space<vmem>>, %arg7: memref<1x128xf32, #tpu.memory_space<vmem>>, %arg8: memref<128x128xf32, #tpu.memory_space<vmem>>) attributes {dimension_semantics = [#tpu.dimension_semantics<parallel>], iteration_bounds = array<i64: 2>, scalar_prefetch = 0 : i64, scratch_operands = 0 : i64, tpu.core_type = #tpu.core_type<tc>, window_params = [{transform_indices = @transform_0, window_bounds = array<i64: 128, 16>}, {pipeline_mode = #tpu.pipeline_mode<synchronous>, transform_indices = @transform_1, window_bounds = array<i64: 16, 32>}, {pipeline_mode = #tpu.pipeline_mode<synchronous>, transform_indices = @transform_2, window_bounds = array<i64: 1, 32>}, {pipeline_mode = #tpu.pipeline_mode<synchronous>, transform_indices = @transform_3, window_bounds = array<i64: 32, 32>}, {pipeline_mode = #tpu.pipeline_mode<synchronous>, transform_indices = @transform_4, window_bounds = array<i64: 1, 32>}, {pipeline_mode = #tpu.pipeline_mode<synchronous>, transform_indices = @transform_5, window_bounds = array<i64: 32, 128>}, {pipeline_mode = #tpu.pipeline_mode<synchronous>, transform_indices = @transform_6, window_bounds = array<i64: 1, 128>}, {transform_indices = @transform_7, window_bounds = array<i64: 128, 128>}]} {
    %c0 = arith.constant 0 : index
    %c0_0 = arith.constant 0 : index
    %0 = vector.load %arg1[%c0, %c0_0] : memref<128x16xbf16, #tpu.memory_space<vmem>>, vector<128x16xbf16>
    %c0_1 = arith.constant 0 : index
    %c0_2 = arith.constant 0 : index
    %1 = vector.load %arg2[%c0_1, %c0_2] : memref<16x32xbf16, #tpu.memory_space<vmem>>, vector<16x32xbf16>
    %cst = arith.constant dense<0.000000e+00> : vector<128x32xf32>
    %2 = tpu.matmul %0, %1, %cst {dimension_numbers = #tpu.dot_dimension_numbers<[1], [0], [0], [1], [0, 0, 1, 1], [], []>} : vector<128x16xbf16>, vector<16x32xbf16>, vector<128x32xf32> -> vector<128x32xf32>
    %c0_3 = arith.constant 0 : index
    %c0_4 = arith.constant 0 : index
    %3 = vector.load %arg3[%c0_3, %c0_4] : memref<1x32xf32, #tpu.memory_space<vmem>>, vector<1x32xf32>
    %4 = vector.broadcast %3 : vector<1x32xf32> to vector<128x32xf32>
    %5 = arith.addf %2, %4 : vector<128x32xf32>
    %cst_5 = arith.constant 0.000000e+00 : f32
    %6 = vector.broadcast %cst_5 : f32 to vector<128x32xf32>
    %7 = arith.maximumf %5, %6 : vector<128x32xf32>
    %8 = arith.truncf %7 : vector<128x32xf32> to vector<128x32xbf16>
    %c0_6 = arith.constant 0 : index
    %c0_7 = arith.constant 0 : index
    %9 = vector.load %arg4[%c0_6, %c0_7] : memref<32x32xbf16, #tpu.memory_space<vmem>>, vector<32x32xbf16>
    %cst_8 = arith.constant dense<0.000000e+00> : vector<128x32xf32>
    %10 = tpu.matmul %8, %9, %cst_8 {dimension_numbers = #tpu.dot_dimension_numbers<[1], [0], [0], [1], [0, 0, 1, 1], [], []>} : vector<128x32xbf16>, vector<32x32xbf16>, vector<128x32xf32> -> vector<128x32xf32>
    %c0_9 = arith.constant 0 : index
    %c0_10 = arith.constant 0 : index
    %11 = vector.load %arg5[%c0_9, %c0_10] : memref<1x32xf32, #tpu.memory_space<vmem>>, vector<1x32xf32>
    %12 = vector.broadcast %11 : vector<1x32xf32> to vector<128x32xf32>
    %13 = arith.addf %10, %12 : vector<128x32xf32>
    %cst_11 = arith.constant 0.000000e+00 : f32
    %14 = vector.broadcast %cst_11 : f32 to vector<128x32xf32>
    %15 = arith.maximumf %13, %14 : vector<128x32xf32>
    %16 = arith.truncf %15 : vector<128x32xf32> to vector<128x32xbf16>
    %c0_12 = arith.constant 0 : index
    %c0_13 = arith.constant 0 : index
    %17 = vector.load %arg6[%c0_12, %c0_13] : memref<32x128xbf16, #tpu.memory_space<vmem>>, vector<32x128xbf16>
    %cst_14 = arith.constant dense<0.000000e+00> : vector<128x128xf32>
    %18 = tpu.matmul %16, %17, %cst_14 {dimension_numbers = #tpu.dot_dimension_numbers<[1], [0], [0], [1], [0, 0, 1, 1], [], []>} : vector<128x32xbf16>, vector<32x128xbf16>, vector<128x128xf32> -> vector<128x128xf32>
    %c0_15 = arith.constant 0 : index
    %c0_16 = arith.constant 0 : index
    %19 = vector.load %arg7[%c0_15, %c0_16] : memref<1x128xf32, #tpu.memory_space<vmem>>, vector<1x128xf32>
    %20 = vector.broadcast %19 : vector<1x128xf32> to vector<128x128xf32>
    %21 = arith.addf %18, %20 : vector<128x128xf32>
    %c0_17 = arith.constant 0 : index
    %c0_18 = arith.constant 0 : index
    %22 = vector.load %arg8[%c0_17, %c0_18] : memref<128x128xf32, #tpu.memory_space<vmem>>, vector<128x128xf32>
    tpu.vector_store %arg8[%c0_17, %c0_18], %21 {strides = array<i32>} : memref<128x128xf32, #tpu.memory_space<vmem>>, vector<128x128xf32>,
    return
  }
  func.func @transform_0(%arg0: i32) -> (i32, i32) {
    %c0_i32 = arith.constant 0 : i32
    %c0_i32_0 = arith.constant 0 : i32
    return %arg0, %c0_i32 : i32, i32
  }
  func.func @transform_1(%arg0: i32) -> (i32, i32) {
    %c0_i32 = arith.constant 0 : i32
    %c0_i32_0 = arith.constant 0 : i32
    %c0_i32_1 = arith.constant 0 : i32
    return %c0_i32, %c0_i32_0 : i32, i32
  }
  func.func @transform_2(%arg0: i32) -> (i32, i32) {
    %c0_i32 = arith.constant 0 : i32
    %c0_i32_0 = arith.constant 0 : i32
    %c0_i32_1 = arith.constant 0 : i32
    return %c0_i32, %c0_i32_0 : i32, i32
  }
  func.func @transform_3(%arg0: i32) -> (i32, i32) {
    %c0_i32 = arith.constant 0 : i32
    %c0_i32_0 = arith.constant 0 : i32
    %c0_i32_1 = arith.constant 0 : i32
    return %c0_i32, %c0_i32_0 : i32, i32
  }
  func.func @transform_4(%arg0: i32) -> (i32, i32) {
    %c0_i32 = arith.constant 0 : i32
    %c0_i32_0 = arith.constant 0 : i32
    %c0_i32_1 = arith.constant 0 : i32
    return %c0_i32, %c0_i32_0 : i32, i32
  }
  func.func @transform_5(%arg0: i32) -> (i32, i32) {
    %c0_i32 = arith.constant 0 : i32
    %c0_i32_0 = arith.constant 0 : i32
    %c0_i32_1 = arith.constant 0 : i32
    return %c0_i32, %c0_i32_0 : i32, i32
  }
  func.func @transform_6(%arg0: i32) -> (i32, i32) {
    %c0_i32 = arith.constant 0 : i32
    %c0_i32_0 = arith.constant 0 : i32
    %c0_i32_1 = arith.constant 0 : i32
    return %c0_i32, %c0_i32_0 : i32, i32
  }
  func.func @transform_7(%arg0: i32) -> (i32, i32) {
    %c0_i32 = arith.constant 0 : i32
    %c0_i32_0 = arith.constant 0 : i32
    return %arg0, %c0_i32 : i32, i32
  }
}

</mosaic_0001>

<llo_original>
// kernel: tpu_custom_call.1
$region0: #{tpu_custom_call.1}
  #allocation0 [shape = 'u32[]', space=smem, size = 0x4, offset = 0x4, fixed_abs, tag = 'smem constant byte address 0x4 - core index']
  #allocation1 [shape = 'u32[144,128]{1,0:T(1,128)}', space=vmem, size = 0x12000, scoped, tag = 'internal scratch']
  %s0 = inlined_call_operand.vmem [shape: bf16[256,16], index: 0, kind: input, shape index: {}]
  %s1 = inlined_call_operand.vmem [shape: bf16[16,32], index: 1, kind: input, shape index: {}]
  %s2 = inlined_call_operand.vmem [shape: f32[1,32], index: 2, kind: input, shape index: {}]
  %s3 = inlined_call_operand.vmem [shape: bf16[32,32], index: 3, kind: input, shape index: {}]
  %s4 = inlined_call_operand.vmem [shape: f32[1,32], index: 4, kind: input, shape index: {}]
  %s5 = inlined_call_operand.vmem [shape: bf16[32,128], index: 5, kind: input, shape index: {}]
  %s6 = inlined_call_operand.vmem [shape: f32[1,128], index: 6, kind: input, shape index: {}]
  %s7 = inlined_call_operand.hbm [shape: f32[256,128], index: 7, kind: output, shape index: {}]
  %s8 = sld [smem:[#allocation0]]
  $region61: #{tpu_custom_call.1} parent=0
    _
  %s10 = ssub.s32 1, %s8
  %s11 = scalar_select 0, %s10, %s8
  $region1: #{tpu_custom_call.1} parent=0
    #allocation2 [shape = 'u8[131072]{0}', space=vmem, size = 0x20000, scoped, tag = 'output window, operand 0']
    #allocation3 [shape = 's32[2]{0}', space=sflag, size = 0x8, scoped, tag = 'scoped memory for tpu_custom_call.1']
    %12 = vsyncpa [#allocation3], 0
    %s13 = scalar_lea.sflag [#allocation3], 1
    %14 = vsyncpa %s13, 0
    loop: start=0, step=1, limit=4
    $region2: #{tpu_custom_call.1} parent=1 // loop_pre_header
      _
    $region3: #{tpu_custom_call.1} parent=1 // loop_header
      %s16 = sphi 0, %s20
      %p17 = scmp.ge.s32.totalorder %s16, 4
      %s26 = sphi 0, %s28
      %s29 = sphi 0, %s26
      %s30 = sphi 0, %s29
      %s46 = sphi 0, %s30
      %s50 = sphi 0, %s50
      %s52 = sphi 0, %s50
      %s53 = sphi 0, %s52
      %s67 = sphi 0, %s53
      %s71 = sphi 0, %s71
      %s73 = sphi 0, %s71
      %s74 = sphi 0, %s73
      %s88 = sphi 0, %s74
      %s92 = sphi 0, %s92
      %s94 = sphi 0, %s92
      %s95 = sphi 0, %s94
      %s109 = sphi 0, %s95
      %s113 = sphi 0, %s113
      %s115 = sphi 0, %s113
      %s116 = sphi 0, %s115
      %s130 = sphi 0, %s116
      %s134 = sphi 0, %s134
      %s136 = sphi 0, %s134
      %s137 = sphi 0, %s136
      %s151 = sphi 0, %s137
      %s155 = sphi 0, %s155
      %s157 = sphi 0, %s155
      %s158 = sphi 0, %s157
      %s172 = sphi 0, %s158
      %s178 = sphi 0, %s180
      %s181 = sphi 0, %s178
      %s182 = sphi 0, %s181
      %s198 = sphi 0, %s182
    $region4: #{tpu_custom_call.1} parent=1 // loop_header_branch
      %19 = sbr.rel (%p17) target = $region8
    $region5: #{tpu_custom_call.1} parent=1 // loop_body
      %s21 = ssub.s32 %s16, 1
      %s22 = ssub.s32 %s16, 2
      %s23 = sadd.s32 %s16, 1
      %s24 = ssub.s32 %s16, %s23
      %p25 = scmp.eq.s32.totalorder %s24, 0
      %s27 = sadd.s32 %s26, 1
      %s28 = scalar_select %p25, %s26, %s27
      %p31 = pneg %p25
      %p32 = scmp.eq.s32.totalorder %s16, 1
      %p33 = por %p31, %p32
      %p34 = scmp.ne.s32.totalorder %s26, %s29
      %p35 = scmp.eq.s32.totalorder %s16, 0
      %p36 = por %p34, %p35
      %p37 = scmp.ne.s32.totalorder %s26, %s29
      %p38 = scmp.eq.s32.totalorder %s21, 1
      %p39 = por %p37, %p38
      %p40 = scmp.ne.s32.totalorder %s29, %s30
      %p41 = scmp.eq.s32.totalorder %s21, 0
      %p42 = por %p40, %p41
      %p43 = scmp.ne.s32.totalorder %s29, %s30
      %p44 = scmp.eq.s32.totalorder %s22, 1
      %p45 = por %p43, %p44
      %p47 = scmp.ne.s32.totalorder %s30, %s46
      %p48 = scmp.eq.s32.totalorder %s22, 0
      %p49 = por %p47, %p48
      %s51 = sadd.s32 %s50, 1
      %p54 = scmp.eq.s32.totalorder %s16, 1
      %p55 = scmp.ne.s32.totalorder %s50, %s52
      %p56 = scmp.eq.s32.totalorder %s16, 0
      %p57 = por %p55, %p56
      %p58 = scmp.ne.s32.totalorder %s50, %s52
      %p59 = scmp.eq.s32.totalorder %s21, 1
      %p60 = por %p58, %p59
      %p61 = scmp.ne.s32.totalorder %s52, %s53
      %p62 = scmp.eq.s32.totalorder %s21, 0
      %p63 = por %p61, %p62
      %p64 = scmp.ne.s32.totalorder %s52, %s53
      %p65 = scmp.eq.s32.totalorder %s22, 1
      %p66 = por %p64, %p65
      %p68 = scmp.ne.s32.totalorder %s53, %s67
      %p69 = scmp.eq.s32.totalorder %s22, 0
      %p70 = por %p68, %p69
      %s72 = sadd.s32 %s71, 1
      %p75 = scmp.eq.s32.totalorder %s16, 1
      %p76 = scmp.ne.s32.totalorder %s71, %s73
      %p77 = scmp.eq.s32.totalorder %s16, 0
      %p78 = por %p76, %p77
      %p79 = scmp.ne.s32.totalorder %s71, %s73
      %p80 = scmp.eq.s32.totalorder %s21, 1
      %p81 = por %p79, %p80
      %p82 = scmp.ne.s32.totalorder %s73, %s74
      %p83 = scmp.eq.s32.totalorder %s21, 0
      %p84 = por %p82, %p83
      %p85 = scmp.ne.s32.totalorder %s73, %s74
      %p86 = scmp.eq.s32.totalorder %s22, 1
      %p87 = por %p85, %p86
      %p89 = scmp.ne.s32.totalorder %s74, %s88
      %p90 = scmp.eq.s32.totalorder %s22, 0
      %p91 = por %p89, %p90
      %s93 = sadd.s32 %s92, 1
      %p96 = scmp.eq.s32.totalorder %s16, 1
      %p97 = scmp.ne.s32.totalorder %s92, %s94
      %p98 = scmp.eq.s32.totalorder %s16, 0
      %p99 = por %p97, %p98
      %p100 = scmp.ne.s32.totalorder %s92, %s94
      %p101 = scmp.eq.s32.totalorder %s21, 1
      %p102 = por %p100, %p101
      %p103 = scmp.ne.s32.totalorder %s94, %s95
      %p104 = scmp.eq.s32.totalorder %s21, 0
      %p105 = por %p103, %p104
      %p106 = scmp.ne.s32.totalorder %s94, %s95
      %p107 = scmp.eq.s32.totalorder %s22, 1
      %p108 = por %p106, %p107
      %p110 = scmp.ne.s32.totalorder %s95, %s109
      %p111 = scmp.eq.s32.totalorder %s22, 0
      %p112 = por %p110, %p111
      %s114 = sadd.s32 %s113, 1
      %p117 = scmp.eq.s32.totalorder %s16, 1
      %p118 = scmp.ne.s32.totalorder %s113, %s115
      %p119 = scmp.eq.s32.totalorder %s16, 0
      %p120 = por %p118, %p119
      %p121 = scmp.ne.s32.totalorder %s113, %s115
      %p122 = scmp.eq.s32.totalorder %s21, 1
      %p123 = por %p121, %p122
      %p124 = scmp.ne.s32.totalorder %s115, %s116
      %p125 = scmp.eq.s32.totalorder %s21, 0
      %p126 = por %p124, %p125
      %p127 = scmp.ne.s32.totalorder %s115, %s116
      %p128 = scmp.eq.s32.totalorder %s22, 1
      %p129 = por %p127, %p128
      %p131 = scmp.ne.s32.totalorder %s116, %s130
      %p132 = scmp.eq.s32.totalorder %s22, 0
      %p133 = por %p131, %p132
      %s135 = sadd.s32 %s134, 1
      %p138 = scmp.eq.s32.totalorder %s16, 1
      %p139 = scmp.ne.s32.totalorder %s134, %s136
      %p140 = scmp.eq.s32.totalorder %s16, 0
      %p141 = por %p139, %p140
      %p142 = scmp.ne.s32.totalorder %s134, %s136
      %p143 = scmp.eq.s32.totalorder %s21, 1
      %p144 = por %p142, %p143
      %p145 = scmp.ne.s32.totalorder %s136, %s137
      %p146 = scmp.eq.s32.totalorder %s21, 0
      %p147 = por %p145, %p146
      %p148 = scmp.ne.s32.totalorder %s136, %s137
      %p149 = scmp.eq.s32.totalorder %s22, 1
      %p150 = por %p148, %p149
      %p152 = scmp.ne.s32.totalorder %s137, %s151
      %p153 = scmp.eq.s32.totalorder %s22, 0
      %p154 = por %p152, %p153
      %s156 = sadd.s32 %s155, 1
      %p159 = scmp.eq.s32.totalorder %s16, 1
      %p160 = scmp.ne.s32.totalorder %s155, %s157
      %p161 = scmp.eq.s32.totalorder %s16, 0
      %p162 = por %p160, %p161
      %p163 = scmp.ne.s32.totalorder %s155, %s157
      %p164 = scmp.eq.s32.totalorder %s21, 1
      %p165 = por %p163, %p164
      %p166 = scmp.ne.s32.totalorder %s157, %s158
      %p167 = scmp.eq.s32.totalorder %s21, 0
      %p168 = por %p166, %p167
      %p169 = scmp.ne.s32.totalorder %s157, %s158
      %p170 = scmp.eq.s32.totalorder %s22, 1
      %p171 = por %p169, %p170
      %p173 = scmp.ne.s32.totalorder %s158, %s172
      %p174 = scmp.eq.s32.totalorder %s22, 0
      %p175 = por %p173, %p174
      %s176 = ssub.s32 %s16, %s23
      %p177 = scmp.eq.s32.totalorder %s176, 0
      %s179 = sadd.s32 %s178, 1
      %s180 = scalar_select %p177, %s178, %s179
      %p183 = pneg %p177
      %p184 = scmp.eq.s32.totalorder %s16, 1
      %p185 = por %p183, %p184
      %p186 = scmp.ne.s32.totalorder %s178, %s181
      %p187 = scmp.eq.s32.totalorder %s16, 0
      %p188 = por %p186, %p187
      %p189 = scmp.ne.s32.totalorder %s178, %s181
      %p190 = scmp.eq.s32.totalorder %s21, 1
      %p191 = por %p189, %p190
      %p192 = scmp.ne.s32.totalorder %s181, %s182
      %p193 = scmp.eq.s32.totalorder %s21, 0
      %p194 = por %p192, %p193
      %p195 = scmp.ne.s32.totalorder %s181, %s182
      %p196 = scmp.eq.s32.totalorder %s22, 1
      %p197 = por %p195, %p196
      %p199 = scmp.ne.s32.totalorder %s182, %s198
      %p200 = scmp.eq.s32.totalorder %s22, 0
      %p201 = por %p199, %p200
      %p202 = scmp.le.s32.totalorder 1, %s16
      %p203 = scmp.lt.s32.totalorder %s16, 3
      %p204 = pnand %p202, %p203
      %p205 = pneg %p204
      // Predicated region
      $region9: #{tpu_custom_call.1} parent=5 // pred_check
        _
      $region10: #{tpu_custom_call.1} parent=5 // pred_check_branch
        %207 = sbr.rel (%p204) target = $region12
      $region11: #{tpu_custom_call.1} parent=5 // pred_region
        %s208 = ssub.s32 %s16, 1
        // Predicated region
        $region13: #{tpu_custom_call.1} parent=11 // pred_check
          %p209 = pneg %p63
        $region14: #{tpu_custom_call.1} parent=11 // pred_check_branch
          %211 = sbr.rel (%p209) target = $region16
        $region15: #{tpu_custom_call.1} parent=11 // pred_region
          _
        $region16: #{tpu_custom_call.1} parent=11 // pred_fallthru
          _
        // Predicated region
        $region17: #{tpu_custom_call.1} parent=11 // pred_check
          %p212 = pneg %p84
        $region18: #{tpu_custom_call.1} parent=11 // pred_check_branch
          %214 = sbr.rel (%p212) target = $region20
        $region19: #{tpu_custom_call.1} parent=11 // pred_region
          _
        $region20: #{tpu_custom_call.1} parent=11 // pred_fallthru
          _
        // Predicated region
        $region21: #{tpu_custom_call.1} parent=11 // pred_check
          %p215 = pneg %p105
        $region22: #{tpu_custom_call.1} parent=11 // pred_check_branch
          %217 = sbr.rel (%p215) target = $region24
        $region23: #{tpu_custom_call.1} parent=11 // pred_region
          _
        $region24: #{tpu_custom_call.1} parent=11 // pred_fallthru
          _
        // Predicated region
        $region25: #{tpu_custom_call.1} parent=11 // pred_check
          %p218 = pneg %p126
        $region26: #{tpu_custom_call.1} parent=11 // pred_check_branch
          %220 = sbr.rel (%p218) target = $region28
        $region27: #{tpu_custom_call.1} parent=11 // pred_region
          _
        $region28: #{tpu_custom_call.1} parent=11 // pred_fallthru
          _
        // Predicated region
        $region29: #{tpu_custom_call.1} parent=11 // pred_check
          %p221 = pneg %p147
        $region30: #{tpu_custom_call.1} parent=11 // pred_check_branch
          %223 = sbr.rel (%p221) target = $region32
        $region31: #{tpu_custom_call.1} parent=11 // pred_region
          _
        $region32: #{tpu_custom_call.1} parent=11 // pred_fallthru
          _
        // Predicated region
        $region33: #{tpu_custom_call.1} parent=11 // pred_check
          %p224 = pneg %p168
        $region34: #{tpu_custom_call.1} parent=11 // pred_check_branch
          %226 = sbr.rel (%p224) target = $region36
        $region35: #{tpu_custom_call.1} parent=11 // pred_region
          _
        $region36: #{tpu_custom_call.1} parent=11 // pred_fallthru
          _
      $region12: #{tpu_custom_call.1} parent=5 // pred_fallthru
        _
      %p227 = scmp.lt.s32.totalorder %s16, 2
      // Predicated region
      $region37: #{tpu_custom_call.1} parent=5 // pred_check
        %p228 = pneg %p227
      $region38: #{tpu_custom_call.1} parent=5 // pred_check_branch
        %230 = sbr.rel (%p228) target = $region40
      $region39: #{tpu_custom_call.1} parent=5 // pred_region
        // Predicated region
        $region41: #{tpu_custom_call.1} parent=39 // pred_check
          %p231 = pneg %p36
        $region42: #{tpu_custom_call.1} parent=39 // pred_check_branch
          %233 = sbr.rel (%p231) target = $region44
        $region43: #{tpu_custom_call.1} parent=39 // pred_region
          %s234 = smul.u32 16, %s16
          %p235 = scmp.lt.s32.totalorder %s234, 31
          %s236 = scalar_select %p235, %s234, 31
          %s237 = smul.addr %s236, 4
          %s238 = scalar_lea.vmem %s0, %s237
          %s239 = smul.u32 16, %s16
        $region44: #{tpu_custom_call.1} parent=39 // pred_fallthru
          _
      $region40: #{tpu_custom_call.1} parent=5 // pred_fallthru
        _
      %p240 = scmp.le.s32.totalorder 1, %s16
      %p241 = scmp.lt.s32.totalorder %s16, 3
      %p242 = pnand %p240, %p241
      %p243 = pneg %p242
      // Predicated region
      $region45: #{tpu_custom_call.1} parent=5 // pred_check
        _
      $region46: #{tpu_custom_call.1} parent=5 // pred_check_branch
        %245 = sbr.rel (%p242) target = $region48
      $region47: #{tpu_custom_call.1} parent=5 // pred_region
        %s246 = ssub.s32 %s16, 1
        %s247 = smul.u32 16, %s21
        %p248 = scmp.lt.s32.totalorder %s247, 31
        %s249 = scalar_select %p248, %s247, 31
        %s250 = smul.addr %s249, 4
        %s251 = scalar_lea.vmem %s0, %s250
        %p252 = pneg %p42
        %p253 = pneg %p39
        %p254 = pneg %p63
        %p255 = pneg %p60
        %p256 = pneg %p84
        %p257 = pneg %p81
        %p258 = pneg %p105
        %p259 = pneg %p102
        %p260 = pneg %p126
        %p261 = pneg %p123
        %p262 = pneg %p147
        %p263 = pneg %p144
        %p264 = pneg %p168
        %p265 = pneg %p165
        %p266 = pneg %p194
        %p267 = pneg %p191
        %s268 = sand.u32 %s181, 1
        %s269 = scalar_lea.sflag [#allocation3], %s268
        %s270 = sand.u32 %s181, 1
        %s271 = smul.addr %s270, 128
        %s272 = scalar_lea.vmem [#allocation2], %s271
        %s273 = smul.u32 16, %s21
        %p274 = scmp.lt.s32.totalorder %s273, 31
        %s275 = scalar_select %p274, %s273, 31
        %s276 = smul.addr %s275, 4
        %s277 = scalar_lea.vmem %s0, %s276
        %s278 = smul.u32 16, %s21
        %s279 = smul.u32 16, %s21
        %v281 = vld [vmem:[%s277] sm:$0xf]
        %v282 = vld [vmem:[%s277 + $0x4] sm:$0xf]
        %v283 = vld [vmem:[%s277 + $0x8] sm:$0xf]
        %v284 = vld [vmem:[%s277 + $0xc] sm:$0xf]
        %v285 = vld [vmem:[%s277 + $0x10] sm:$0xf]
        %v286 = vld [vmem:[%s277 + $0x14] sm:$0xf]
        %v287 = vld [vmem:[%s277 + $0x18] sm:$0xf]
        %v288 = vld [vmem:[%s277 + $0x1c] sm:$0xf]
        %v289 = vld [vmem:[%s277 + $0x20] sm:$0xf]
        %v290 = vld [vmem:[%s277 + $0x24] sm:$0xf]
        %v291 = vld [vmem:[%s277 + $0x28] sm:$0xf]
        %v292 = vld [vmem:[%s277 + $0x2c] sm:$0xf]
        %v293 = vld [vmem:[%s277 + $0x30] sm:$0xf]
        %v294 = vld [vmem:[%s277 + $0x34] sm:$0xf]
        %v295 = vld [vmem:[%s277 + $0x38] sm:$0xf]
        %v296 = vld [vmem:[%s277 + $0x3c] sm:$0xf]
        %v297 = vld [vmem:[%s1] sm:$0xf]
        %v298 = vld [vmem:[%s1 + $0x4] sm:$0xf]
        %v299 = vld [vmem:[%s2] sm:$0x1]
        %v301 = vlaneseq
        %v302 = vshrl.u32 %v301, 7
        %v303 = vsub.s32 0, %v302
        %v304 = vrot.slane %v299, %v303
        %v322 = vunpack.c.l.b16 %v281
        %v323 = vunpack.c.l.b16 %v282
        %v324 = vunpack.c.l.b16 %v283
        %v325 = vunpack.c.l.b16 %v284
        %v326 = vunpack.c.l.b16 %v285
        %v327 = vunpack.c.l.b16 %v286
        %v328 = vunpack.c.l.b16 %v287
        %v329 = vunpack.c.l.b16 %v288
        %v330 = vunpack.c.l.b16 %v289
        %v331 = vunpack.c.l.b16 %v290
        %v332 = vunpack.c.l.b16 %v291
        %v333 = vunpack.c.l.b16 %v292
        %v334 = vunpack.c.l.b16 %v293
        %v335 = vunpack.c.l.b16 %v294
        %v336 = vunpack.c.l.b16 %v295
        %v337 = vunpack.c.l.b16 %v296
        %v338 = vpack.c.b16 %v323, %v322
        %v339 = vpack.c.b16 %v325, %v324
        %v340 = vpack.c.b16 %v327, %v326
        %v341 = vpack.c.b16 %v329, %v328
        %v342 = vpack.c.b16 %v331, %v330
        %v343 = vpack.c.b16 %v333, %v332
        %v344 = vpack.c.b16 %v335, %v334
        %v345 = vpack.c.b16 %v337, %v336
        %v348 = vunpack.c.l.b16 %v297
        %v349 = vunpack.c.l.b16 %v298
        %v350 = vpack.c.b16 %v349, %v348
        %vm352 = vcmask 130048
        %v354 = vsel %vm352, %v338, 0
        %v357 = vsel %vm352, %v339, 0
        %v360 = vsel %vm352, %v340, 0
        %v363 = vsel %vm352, %v341, 0
        %v366 = vsel %vm352, %v342, 0
        %v369 = vsel %vm352, %v343, 0
        %v372 = vsel %vm352, %v344, 0
        %v375 = vsel %vm352, %v345, 0
        %377 = vmatprep.subr.bf16.mxu0 0
        %378 = vmatpush1.bf16.msra.mxu0 %v350
        %379 = vmatprep.subr.bf16.mxu0 0
        %380 = vmatpush1.bf16.msra.mxu0 0
        %381 = vmatprep.subr.bf16.mxu0 0
        %382 = vmatpush1.bf16.msra.mxu0 0
        %383 = vmatprep.subr.bf16.mxu0 0
        %384 = vmatpush1.bf16.msra.mxu0 0
        %385 = vmatprep.subr.bf16.mxu0 0
        %386 = vmatpush1.bf16.msra.mxu0 0
        %387 = vmatprep.subr.bf16.mxu0 0
        %388 = vmatpush1.bf16.msra.mxu0 0
        %389 = vmatprep.subr.bf16.mxu0 0
        %390 = vmatpush1.bf16.msra.mxu0 0
        %391 = vmatprep.subr.bf16.mxu0 0
        %392 = vmatpush1.bf16.msra.mxu0 0
        %393 = vmatprep.subr.bf16.mxu0 0
        %394 = vmatpush1.bf16.msra.mxu0 0
        %395 = vmatprep.subr.bf16.mxu0 0
        %396 = vmatpush1.bf16.msra.mxu0 0
        %397 = vmatprep.subr.bf16.mxu0 0
        %398 = vmatpush1.bf16.msra.mxu0 0
        %399 = vmatprep.subr.bf16.mxu0 0
        %400 = vmatpush1.bf16.msra.mxu0 0
        %401 = vmatprep.subr.bf16.mxu0 0
        %402 = vmatpush1.bf16.msra.mxu0 0
        %403 = vmatprep.subr.bf16.mxu0 0
        %404 = vmatpush1.bf16.msra.mxu0 0
        %405 = vmatprep.subr.bf16.mxu0 0
        %406 = vmatpush1.bf16.msra.mxu0 0
        %407 = vmatprep.subr.bf16.mxu0 0
        %408 = vmatpush1.bf16.msra.mxu0 0
        %409 = vmatprep.mubr.bf16.mxu0 0
        %410 = vmatmul.mubr.bf16.gmra.mrb[0].mxu0 %v354
        %v411 = vpop.f32.mrb[0].mxu0
        %v412 = vadd.f32 %v304, %v411
        %v413 = vpop.f32.mrb[0].mxu0
        %v414 = vpop.f32.mrb[0].mxu0
        %v415 = vadd.f32 %v304, %v414
        %v416 = vpop.f32.mrb[0].mxu0
        %417 = vmatprep.mubr.bf16.mxu0 0
        %418 = vmatmul.mubr.bf16.gmra.mrb[0].mxu0 %v357
        %v419 = vpop.f32.mrb[0].mxu0
        %v420 = vadd.f32 %v304, %v419
        %v421 = vpop.f32.mrb[0].mxu0
        %v422 = vpop.f32.mrb[0].mxu0
        %v423 = vadd.f32 %v304, %v422
        %v424 = vpop.f32.mrb[0].mxu0
        %425 = vmatprep.mubr.bf16.mxu0 0
        %426 = vmatmul.mubr.bf16.gmra.mrb[0].mxu0 %v360
        %v427 = vpop.f32.mrb[0].mxu0
        %v428 = vadd.f32 %v304, %v427
        %v429 = vpop.f32.mrb[0].mxu0
        %v430 = vpop.f32.mrb[0].mxu0
        %v431 = vadd.f32 %v304, %v430
        %v432 = vpop.f32.mrb[0].mxu0
        %433 = vmatprep.mubr.bf16.mxu0 0
        %434 = vmatmul.mubr.bf16.gmra.mrb[0].mxu0 %v363
        %v435 = vpop.f32.mrb[0].mxu0
        %v436 = vadd.f32 %v304, %v435
        %v437 = vpop.f32.mrb[0].mxu0
        %v438 = vpop.f32.mrb[0].mxu0
        %v439 = vadd.f32 %v304, %v438
        %v440 = vpop.f32.mrb[0].mxu0
        %441 = vmatprep.mubr.bf16.mxu0 0
        %442 = vmatmul.mubr.bf16.gmra.mrb[0].mxu0 %v366
        %v443 = vpop.f32.mrb[0].mxu0
        %v444 = vadd.f32 %v304, %v443
        %v445 = vpop.f32.mrb[0].mxu0
        %v446 = vpop.f32.mrb[0].mxu0
        %v447 = vadd.f32 %v304, %v446
        %v448 = vpop.f32.mrb[0].mxu0
        %449 = vmatprep.mubr.bf16.mxu0 0
        %450 = vmatmul.mubr.bf16.gmra.mrb[0].mxu0 %v369
        %v451 = vpop.f32.mrb[0].mxu0
        %v452 = vadd.f32 %v304, %v451
        %v453 = vpop.f32.mrb[0].mxu0
        %v454 = vpop.f32.mrb[0].mxu0
        %v455 = vadd.f32 %v304, %v454
        %v456 = vpop.f32.mrb[0].mxu0
        %457 = vmatprep.mubr.bf16.mxu0 0
        %458 = vmatmul.mubr.bf16.gmra.mrb[0].mxu0 %v372
        %v459 = vpop.f32.mrb[0].mxu0
        %v460 = vadd.f32 %v304, %v459
        %v461 = vpop.f32.mrb[0].mxu0
        %v462 = vpop.f32.mrb[0].mxu0
        %v463 = vadd.f32 %v304, %v462
        %v464 = vpop.f32.mrb[0].mxu0
        %465 = vmatprep.mubr.bf16.mxu0 0
        %466 = vmatmul.mubr.bf16.gmra.mrb[0].mxu0 %v375
        %v467 = vpop.f32.mrb[0].mxu0
        %v468 = vadd.f32 %v304, %v467
        %v469 = vpop.f32.mrb[0].mxu0
        %v470 = vpop.f32.mrb[0].mxu0
        %v471 = vadd.f32 %v304, %v470
        %v472 = vpop.f32.mrb[0].mxu0
        %473 = vdwg.mxu0
        %v474 = vmax.f32 %v412, 0.0
        %v475 = vmax.f32 %v415, 0.0
        %v476 = vmax.f32 %v420, 0.0
        %v477 = vmax.f32 %v423, 0.0
        %v478 = vmax.f32 %v428, 0.0
        %v479 = vmax.f32 %v431, 0.0
        %v480 = vmax.f32 %v436, 0.0
        %v481 = vmax.f32 %v439, 0.0
        %v482 = vmax.f32 %v444, 0.0
        %v483 = vmax.f32 %v447, 0.0
        %v484 = vmax.f32 %v452, 0.0
        %v485 = vmax.f32 %v455, 0.0
        %v486 = vmax.f32 %v460, 0.0
        %v487 = vmax.f32 %v463, 0.0
        %v488 = vmax.f32 %v468, 0.0
        %v489 = vmax.f32 %v471, 0.0
        %v490 = vpack.c.bf16 %v475, %v474
        %v491 = vpack.c.bf16 %v477, %v476
        %v492 = vpack.c.bf16 %v479, %v478
        %v493 = vpack.c.bf16 %v481, %v480
        %v494 = vpack.c.bf16 %v483, %v482
        %v495 = vpack.c.bf16 %v485, %v484
        %v496 = vpack.c.bf16 %v487, %v486
        %v497 = vpack.c.bf16 %v489, %v488
        %v498 = vld [vmem:[%s3] sm:$0xf]
        %v499 = vld [vmem:[%s3 + $0x4] sm:$0xf]
        %v500 = vld [vmem:[%s3 + $0x8] sm:$0xf]
        %v501 = vld [vmem:[%s3 + $0xc] sm:$0xf]
        %v502 = vld [vmem:[%s4] sm:$0x1]
        %v504 = vlaneseq
        %v505 = vshrl.u32 %v504, 7
        %v506 = vsub.s32 0, %v505
        %v507 = vrot.slane %v502, %v506
        %v513 = vunpack.c.l.b16 %v498
        %v514 = vunpack.c.l.b16 %v499
        %v515 = vunpack.c.l.b16 %v500
        %v516 = vunpack.c.l.b16 %v501
        %v517 = vpack.c.b16 %v514, %v513
        %v518 = vpack.c.b16 %v516, %v515
        %vm521 = vcmask 261120
        %v523 = vsel %vm521, %v490, 0
        %v526 = vsel %vm521, %v491, 0
        %v529 = vsel %vm521, %v492, 0
        %v532 = vsel %vm521, %v493, 0
        %v535 = vsel %vm521, %v494, 0
        %v538 = vsel %vm521, %v495, 0
        %v541 = vsel %vm521, %v496, 0
        %v544 = vsel %vm521, %v497, 0
        %546 = vmatprep.subr.bf16.mxu0 0
        %547 = vmatpush1.bf16.msra.mxu0 %v517
        %548 = vmatprep.subr.bf16.mxu0 0
        %549 = vmatpush1.bf16.msra.mxu0 %v518
        %550 = vmatprep.subr.bf16.mxu0 0
        %551 = vmatpush1.bf16.msra.mxu0 0
        %552 = vmatprep.subr.bf16.mxu0 0
        %553 = vmatpush1.bf16.msra.mxu0 0
        %554 = vmatprep.subr.bf16.mxu0 0
        %555 = vmatpush1.bf16.msra.mxu0 0
        %556 = vmatprep.subr.bf16.mxu0 0
        %557 = vmatpush1.bf16.msra.mxu0 0
        %558 = vmatprep.subr.bf16.mxu0 0
        %559 = vmatpush1.bf16.msra.mxu0 0
        %560 = vmatprep.subr.bf16.mxu0 0
        %561 = vmatpush1.bf16.msra.mxu0 0
        %562 = vmatprep.subr.bf16.mxu0 0
        %563 = vmatpush1.bf16.msra.mxu0 0
        %564 = vmatprep.subr.bf16.mxu0 0
        %565 = vmatpush1.bf16.msra.mxu0 0
        %566 = vmatprep.subr.bf16.mxu0 0
        %567 = vmatpush1.bf16.msra.mxu0 0
        %568 = vmatprep.subr.bf16.mxu0 0
        %569 = vmatpush1.bf16.msra.mxu0 0
        %570 = vmatprep.subr.bf16.mxu0 0
        %571 = vmatpush1.bf16.msra.mxu0 0
        %572 = vmatprep.subr.bf16.mxu0 0
        %573 = vmatpush1.bf16.msra.mxu0 0
        %574 = vmatprep.subr.bf16.mxu0 0
        %575 = vmatpush1.bf16.msra.mxu0 0
        %576 = vmatprep.subr.bf16.mxu0 0
        %577 = vmatpush1.bf16.msra.mxu0 0
        %578 = vmatprep.mubr.bf16.mxu0 0
        %579 = vmatmul.mubr.bf16.gmra.mrb[0].mxu0 %v523
        %v580 = vpop.f32.mrb[0].mxu0
        %v581 = vadd.f32 %v507, %v580
        %v582 = vpop.f32.mrb[0].mxu0
        %v583 = vpop.f32.mrb[0].mxu0
        %v584 = vadd.f32 %v507, %v583
        %v585 = vpop.f32.mrb[0].mxu0
        %586 = vmatprep.mubr.bf16.mxu0 0
        %587 = vmatmul.mubr.bf16.gmra.mrb[0].mxu0 %v526
        %v588 = vpop.f32.mrb[0].mxu0
        %v589 = vadd.f32 %v507, %v588
        %v590 = vpop.f32.mrb[0].mxu0
        %v591 = vpop.f32.mrb[0].mxu0
        %v592 = vadd.f32 %v507, %v591
        %v593 = vpop.f32.mrb[0].mxu0
        %594 = vmatprep.mubr.bf16.mxu0 0
        %595 = vmatmul.mubr.bf16.gmra.mrb[0].mxu0 %v529
        %v596 = vpop.f32.mrb[0].mxu0
        %v597 = vadd.f32 %v507, %v596
        %v598 = vpop.f32.mrb[0].mxu0
        %v599 = vpop.f32.mrb[0].mxu0
        %v600 = vadd.f32 %v507, %v599
        %v601 = vpop.f32.mrb[0].mxu0
        %602 = vmatprep.mubr.bf16.mxu0 0
        %603 = vmatmul.mubr.bf16.gmra.mrb[0].mxu0 %v532
        %v604 = vpop.f32.mrb[0].mxu0
        %v605 = vadd.f32 %v507, %v604
        %v606 = vpop.f32.mrb[0].mxu0
        %v607 = vpop.f32.mrb[0].mxu0
        %v608 = vadd.f32 %v507, %v607
        %v609 = vpop.f32.mrb[0].mxu0
        %610 = vmatprep.mubr.bf16.mxu0 0
        %611 = vmatmul.mubr.bf16.gmra.mrb[0].mxu0 %v535
        %v612 = vpop.f32.mrb[0].mxu0
        %v613 = vadd.f32 %v507, %v612
        %v614 = vpop.f32.mrb[0].mxu0
        %v615 = vpop.f32.mrb[0].mxu0
        %v616 = vadd.f32 %v507, %v615
        %v617 = vpop.f32.mrb[0].mxu0
        %618 = vmatprep.mubr.bf16.mxu0 0
        %619 = vmatmul.mubr.bf16.gmra.mrb[0].mxu0 %v538
        %v620 = vpop.f32.mrb[0].mxu0
        %v621 = vadd.f32 %v507, %v620
        %v622 = vpop.f32.mrb[0].mxu0
        %v623 = vpop.f32.mrb[0].mxu0
        %v624 = vadd.f32 %v507, %v623
        %v625 = vpop.f32.mrb[0].mxu0
        %626 = vmatprep.mubr.bf16.mxu0 0
        %627 = vmatmul.mubr.bf16.gmra.mrb[0].mxu0 %v541
        %v628 = vpop.f32.mrb[0].mxu0
        %v629 = vadd.f32 %v507, %v628
        %v630 = vpop.f32.mrb[0].mxu0
        %v631 = vpop.f32.mrb[0].mxu0
        %v632 = vadd.f32 %v507, %v631
        %v633 = vpop.f32.mrb[0].mxu0
        %634 = vmatprep.mubr.bf16.mxu0 0
        %635 = vmatmul.mubr.bf16.gmra.mrb[0].mxu0 %v544
        %v636 = vpop.f32.mrb[0].mxu0
        %v637 = vadd.f32 %v507, %v636
        %v638 = vpop.f32.mrb[0].mxu0
        %v639 = vpop.f32.mrb[0].mxu0
        %v640 = vadd.f32 %v507, %v639
        %v641 = vpop.f32.mrb[0].mxu0
        %642 = vdwg.mxu0
        %v643 = vmax.f32 %v581, 0.0
        %v644 = vmax.f32 %v584, 0.0
        %v645 = vmax.f32 %v589, 0.0
        %v646 = vmax.f32 %v592, 0.0
        %v647 = vmax.f32 %v597, 0.0
        %v648 = vmax.f32 %v600, 0.0
        %v649 = vmax.f32 %v605, 0.0
        %v650 = vmax.f32 %v608, 0.0
        %v651 = vmax.f32 %v613, 0.0
        %v652 = vmax.f32 %v616, 0.0
        %v653 = vmax.f32 %v621, 0.0
        %v654 = vmax.f32 %v624, 0.0
        %v655 = vmax.f32 %v629, 0.0
        %v656 = vmax.f32 %v632, 0.0
        %v657 = vmax.f32 %v637, 0.0
        %v658 = vmax.f32 %v640, 0.0
        %v659 = vpack.c.bf16 %v644, %v643
        %v660 = vpack.c.bf16 %v646, %v645
        %v661 = vpack.c.bf16 %v648, %v647
        %v662 = vpack.c.bf16 %v650, %v649
        %v663 = vpack.c.bf16 %v652, %v651
        %v664 = vpack.c.bf16 %v654, %v653
        %v665 = vpack.c.bf16 %v656, %v655
        %v666 = vpack.c.bf16 %v658, %v657
        %v667 = vld [vmem:[%s5] sm:$0xf]
        %v668 = vld [vmem:[%s5 + $0x4] sm:$0xf]
        %v669 = vld [vmem:[%s5 + $0x8] sm:$0xf]
        %v670 = vld [vmem:[%s5 + $0xc] sm:$0xf]
        %v671 = vld [vmem:[%s6] sm:$0x1]
        %v673 = vlaneseq
        %v674 = vshrl.u32 %v673, 7
        %v675 = vsub.s32 0, %v674
        %v676 = vrot.slane %v671, %v675
        %v682 = vunpack.c.l.b16 %v667
        %v683 = vunpack.c.l.b16 %v668
        %v684 = vunpack.c.l.b16 %v669
        %v685 = vunpack.c.l.b16 %v670
        %v686 = vpack.c.b16 %v683, %v682
        %v687 = vpack.c.b16 %v685, %v684
        %v691 = vsel %vm521, %v659, 0
        %v694 = vsel %vm521, %v660, 0
        %v697 = vsel %vm521, %v661, 0
        %v700 = vsel %vm521, %v662, 0
        %v703 = vsel %vm521, %v663, 0
        %v706 = vsel %vm521, %v664, 0
        %v709 = vsel %vm521, %v665, 0
        %v712 = vsel %vm521, %v666, 0
        %714 = vmatprep.subr.bf16.mxu0 0
        %715 = vmatpush1.bf16.msra.mxu0 %v686
        %716 = vmatprep.subr.bf16.mxu0 0
        %717 = vmatpush1.bf16.msra.mxu0 %v687
        %718 = vmatprep.subr.bf16.mxu0 0
        %719 = vmatpush1.bf16.msra.mxu0 0
        %720 = vmatprep.subr.bf16.mxu0 0
        %721 = vmatpush1.bf16.msra.mxu0 0
        %722 = vmatprep.subr.bf16.mxu0 0
        %723 = vmatpush1.bf16.msra.mxu0 0
        %724 = vmatprep.subr.bf16.mxu0 0
        %725 = vmatpush1.bf16.msra.mxu0 0
        %726 = vmatprep.subr.bf16.mxu0 0
        %727 = vmatpush1.bf16.msra.mxu0 0
        %728 = vmatprep.subr.bf16.mxu0 0
        %729 = vmatpush1.bf16.msra.mxu0 0
        %730 = vmatprep.subr.bf16.mxu0 0
        %731 = vmatpush1.bf16.msra.mxu0 0
        %732 = vmatprep.subr.bf16.mxu0 0
        %733 = vmatpush1.bf16.msra.mxu0 0
        %734 = vmatprep.subr.bf16.mxu0 0
        %735 = vmatpush1.bf16.msra.mxu0 0
        %736 = vmatprep.subr.bf16.mxu0 0
        %737 = vmatpush1.bf16.msra.mxu0 0
        %738 = vmatprep.subr.bf16.mxu0 0
        %739 = vmatpush1.bf16.msra.mxu0 0
        %740 = vmatprep.subr.bf16.mxu0 0
        %741 = vmatpush1.bf16.msra.mxu0 0
        %742 = vmatprep.subr.bf16.mxu0 0
        %743 = vmatpush1.bf16.msra.mxu0 0
        %744 = vmatprep.subr.bf16.mxu0 0
        %745 = vmatpush1.bf16.msra.mxu0 0
        %746 = vmatprep.mubr.bf16.mxu0 0
        %747 = vmatmul.mubr.bf16.gmra.mrb[0].mxu0 %v691
        %v748 = vpop.f32.mrb[0].mxu0
        %v749 = vadd.f32 %v676, %v748
        %v750 = vpop.f32.mrb[0].mxu0
        %v751 = vpop.f32.mrb[0].mxu0
        %v752 = vadd.f32 %v676, %v751
        %v753 = vpop.f32.mrb[0].mxu0
        %754 = vmatprep.mubr.bf16.mxu0 0
        %755 = vmatmul.mubr.bf16.gmra.mrb[0].mxu0 %v694
        %v756 = vpop.f32.mrb[0].mxu0
        %v757 = vadd.f32 %v676, %v756
        %v758 = vpop.f32.mrb[0].mxu0
        %v759 = vpop.f32.mrb[0].mxu0
        %v760 = vadd.f32 %v676, %v759
        %v761 = vpop.f32.mrb[0].mxu0
        %762 = vmatprep.mubr.bf16.mxu0 0
        %763 = vmatmul.mubr.bf16.gmra.mrb[0].mxu0 %v697
        %v764 = vpop.f32.mrb[0].mxu0
        %v765 = vadd.f32 %v676, %v764
        %v766 = vpop.f32.mrb[0].mxu0
        %v767 = vpop.f32.mrb[0].mxu0
        %v768 = vadd.f32 %v676, %v767
        %v769 = vpop.f32.mrb[0].mxu0
        %770 = vmatprep.mubr.bf16.mxu0 0
        %771 = vmatmul.mubr.bf16.gmra.mrb[0].mxu0 %v700
        %v772 = vpop.f32.mrb[0].mxu0
        %v773 = vadd.f32 %v676, %v772
        %v774 = vpop.f32.mrb[0].mxu0
        %v775 = vpop.f32.mrb[0].mxu0
        %v776 = vadd.f32 %v676, %v775
        %v777 = vpop.f32.mrb[0].mxu0
        %778 = vmatprep.mubr.bf16.mxu0 0
        %779 = vmatmul.mubr.bf16.gmra.mrb[0].mxu0 %v703
        %v780 = vpop.f32.mrb[0].mxu0
        %v781 = vadd.f32 %v676, %v780
        %v782 = vpop.f32.mrb[0].mxu0
        %v783 = vpop.f32.mrb[0].mxu0
        %v784 = vadd.f32 %v676, %v783
        %v785 = vpop.f32.mrb[0].mxu0
        %786 = vmatprep.mubr.bf16.mxu0 0
        %787 = vmatmul.mubr.bf16.gmra.mrb[0].mxu0 %v706
        %v788 = vpop.f32.mrb[0].mxu0
        %v789 = vadd.f32 %v676, %v788
        %v790 = vpop.f32.mrb[0].mxu0
        %v791 = vpop.f32.mrb[0].mxu0
        %v792 = vadd.f32 %v676, %v791
        %v793 = vpop.f32.mrb[0].mxu0
        %794 = vmatprep.mubr.bf16.mxu0 0
        %795 = vmatmul.mubr.bf16.gmra.mrb[0].mxu0 %v709
        %v796 = vpop.f32.mrb[0].mxu0
        %v797 = vadd.f32 %v676, %v796
        %v798 = vpop.f32.mrb[0].mxu0
        %v799 = vpop.f32.mrb[0].mxu0
        %v800 = vadd.f32 %v676, %v799
        %v801 = vpop.f32.mrb[0].mxu0
        %802 = vmatprep.mubr.bf16.mxu0 0
        %803 = vmatmul.mubr.bf16.gmra.mrb[0].mxu0 %v712
        %v804 = vpop.f32.mrb[0].mxu0
        %v805 = vadd.f32 %v676, %v804
        %v806 = vpop.f32.mrb[0].mxu0
        %v807 = vpop.f32.mrb[0].mxu0
        %v808 = vadd.f32 %v676, %v807
        %v809 = vpop.f32.mrb[0].mxu0
        %810 = vdwg.mxu0
        %811 = vst [vmem:[%s272] sm:$0xff] %v749
        %812 = vst [vmem:[%s272 + $0x8] sm:$0xff] %v752
        %813 = vst [vmem:[%s272 + $0x10] sm:$0xff] %v757
        %814 = vst [vmem:[%s272 + $0x18] sm:$0xff] %v760
        %815 = vst [vmem:[%s272 + $0x20] sm:$0xff] %v765
        %816 = vst [vmem:[%s272 + $0x28] sm:$0xff] %v768
        %817 = vst [vmem:[%s272 + $0x30] sm:$0xff] %v773
        %818 = vst [vmem:[%s272 + $0x38] sm:$0xff] %v776
        %819 = vst [vmem:[%s272 + $0x40] sm:$0xff] %v781
        %820 = vst [vmem:[%s272 + $0x48] sm:$0xff] %v784
        %821 = vst [vmem:[%s272 + $0x50] sm:$0xff] %v789
        %822 = vst [vmem:[%s272 + $0x58] sm:$0xff] %v792
        %823 = vst [vmem:[%s272 + $0x60] sm:$0xff] %v797
        %824 = vst [vmem:[%s272 + $0x68] sm:$0xff] %v800
        %825 = vst [vmem:[%s272 + $0x70] sm:$0xff] %v805
        %826 = vst [vmem:[%s272 + $0x78] sm:$0xff] %v808
        %s827 = sand.u32 %s181, 1
        %s828 = scalar_lea.sflag [#allocation3], %s827
        %s829 = sand.u32 %s181, 1
        %s830 = smul.addr %s829, 128
        %s831 = scalar_lea.vmem [#allocation2], %s830
        // Predicated region
        $region49: #{tpu_custom_call.1} parent=47 // pred_check
          %p832 = pneg %p191
        $region50: #{tpu_custom_call.1} parent=47 // pred_check_branch
          %834 = sbr.rel (%p832) target = $region52
        $region51: #{tpu_custom_call.1} parent=47 // pred_region
          %s835 = smul.u32 16, %s21
          %s837 = ssub.s32 2048, 2048
          %838 = vsyncadd %s828, %s837
          %s839 = smul.addr %s835, 128
          %s840 = scalar_lea.hbm %s7, %s839
          %s841 = sshll.u32 %s831, 4
          %s842 = int_to_ptr.vmem [resolvable:$true] %s841
          %847 = dma.vmem_to_hbm [thread:$0]  %s842, 2048, %s840, %s828, 128, 128, 8
        $region52: #{tpu_custom_call.1} parent=47 // pred_fallthru
          _
      $region48: #{tpu_custom_call.1} parent=5 // pred_fallthru
        _
      %p848 = scmp.le.s32.totalorder 2, %s16
      // Predicated region
      $region53: #{tpu_custom_call.1} parent=5 // pred_check
        %p849 = pneg %p848
      $region54: #{tpu_custom_call.1} parent=5 // pred_check_branch
        %851 = sbr.rel (%p849) target = $region56
      $region55: #{tpu_custom_call.1} parent=5 // pred_region
        %s852 = ssub.s32 %s16, 2
        // Predicated region
        $region57: #{tpu_custom_call.1} parent=55 // pred_check
          %p853 = pneg %p197
        $region58: #{tpu_custom_call.1} parent=55 // pred_check_branch
          %855 = sbr.rel (%p853) target = $region60
        $region59: #{tpu_custom_call.1} parent=55 // pred_region
          %s856 = sand.u32 %s182, 1
          %s857 = scalar_lea.sflag [#allocation3], %s856
          %s858 = sand.u32 %s182, 1
          %s859 = smul.addr %s858, 128
          %s860 = scalar_lea.vmem [#allocation2], %s859
          %861 = dma.done %s857, 2048
        $region60: #{tpu_custom_call.1} parent=55 // pred_fallthru
          _
      $region56: #{tpu_custom_call.1} parent=5 // pred_fallthru
        _
    $region6: #{tpu_custom_call.1} parent=1 // loop_footer
      %s20 = sadd.s32 1, %s16
    $region7: #{tpu_custom_call.1} parent=1 // loop_footer_branch
      %15 = sbr.rel target = $region3
    $region8: #{tpu_custom_call.1} parent=1 // loop_exit
      _
    %862 = vsyncpa [#allocation3], 1
    %s863 = scalar_lea.sflag [#allocation3], 1
    %864 = vsyncpa %s863, 1

</llo_original>
